<compile_context>
chip_gen: v7x
topology: tpu7x:2x2x1
jax: 0.10.0
libtpu: 0.0.40
codegen_flags: <defaults>
</compile_context>

<pallas_src>
import functools

import numpy as np
import jax
import jax.numpy as jnp
from jax import lax
from jax.experimental import pallas as pl
from jax.experimental.pallas import tpu as pltpu


_LANE = 128            # lane width; vocab / packed-embedding dims padded to this
_TB_DEFAULT = 256      # batch rows per grid step (fast path), multiple of 8


def _round_up(x, m):
    return (x + m - 1) // m * m


def _vmem_tile_bytes(shape, itemsize):
    """Honest VMEM footprint of one buffer: minor dim padded to 128 lanes,
    second-minor padded to 8 sublanes."""
    shape = tuple(int(s) for s in shape)
    if len(shape) == 1:
        shape = (1,) + shape
    lead = 1
    for s in shape[:-2]:
        lead *= s
    return lead * _round_up(shape[-2], 8) * _round_up(shape[-1], _LANE) * itemsize


def _vmem_capacity_bytes():
    try:
        return int(pltpu.get_tpu_info().vmem_capacity_bytes)
    except Exception:
        return 64 << 20          # conservative default = v7x per-TensorCore VMEM


def _ffm_terms(G, num_fields, embed_dim):
    """Shared reduction. G: list of F arrays (TB, Np) float32 with
       G[f][:, t*D:(t+1)*D] = table_t[idx[:, f]]   (t = 0..F-1)
       G[f][:, F*D]         = linear_weight[idx[:, f]]
    Returns (TB, 1) float32 = linear term + sum of pairwise FFM terms."""
    F, D = num_fields, embed_dim

    # Linear term: one lane column of the already-gathered slabs.
    lin = G[0][:, F * D:F * D + 1]
    for f in range(1, F):
        lin = lin + G[f][:, F * D:F * D + 1]

    # FFM term: sum_{i<j} <table_j[idx_i], table_i[idx_j]>.
    # Accumulate per-pair products (each consumed immediately) and do a single
    # lane reduction at the end.
    pair = None
    for i in range(F - 1):
        for j in range(i + 1, F):
            term = G[i][:, j * D:(j + 1) * D] * G[j][:, i * D:(i + 1) * D]
            pair = term if pair is None else pair + term
    if pair is None:
        return lin
    return lin + jnp.sum(pair, axis=1, keepdims=True)


def _ffm_onehot_kernel(idx_ref, w_ref, out_ref, *, num_fields, embed_dim):
    """Fast path: VMEM-resident lane-dense table, one-hot MXU gather per field.

    idx_ref: (TB, F)  int32   offset indices for this batch tile        (VMEM)
    w_ref:   (Vp, Np) f32/bf16 packed tables (F FFM tables + linear col) (VMEM)
    out_ref: (TB, 1)  f32
    """
    F, D = num_fields, embed_dim
    TB = idx_ref.shape[0]
    Vp = w_ref.shape[0]

    idx = idx_ref[...]                                               # (TB, F)
    w = w_ref[...]                                                   # (Vp, Np)
    lane_iota = lax.broadcasted_iota(jnp.int32, (TB, Vp), 1)

    # One weight-stationary matmul per field gathers ALL tables' rows at once.
    G = []
    for f in range(F):
        onehot = (lane_iota == idx[:, f:f + 1]).astype(jnp.float32).astype(w.dtype)
        G.append(jnp.dot(onehot, w, preferred_element_type=jnp.float32))  # (TB, Np)

    out_ref[...] = _ffm_terms(G, F, D)


def _ffm_gather_kernel(idx_ref, w_hbm, out_ref, gbuf, sem,
                       *, num_fields, embed_dim, tile_rows):
    """Large-vocab path: table stays in HBM; gather rows with async DMAs.

    idx_ref: (B_pad*F,)   int32   scalar-prefetched indices             (SMEM)
    w_hbm:   (Vp, Np)     table   packed tables                          (HBM)
    out_ref: (TB, 1)      f32
    gbuf:    (F, TB, Np)  table   gathered row slabs                    (VMEM)
    sem:     (1,)         DMA semaphore
    """
    F, D, TB = num_fields, embed_dim, tile_rows
    b0 = pl.program_id(0) * TB

    # Issue every row-gather DMA of this tile (TB * F single-row copies, all in
    # flight so the scattered HBM reads pipeline against each other).
    for f in range(F):                       # static unroll over fields
        def issue(r, carry, f=f):
            row = idx_ref[(b0 + r) * F + f]
            pltpu.make_async_copy(w_hbm.at[pl.ds(row, 1), :],
                                  gbuf.at[f, pl.ds(r, 1), :],
                                  sem.at[0]).start()
            return carry
        lax.fori_loop(0, TB, issue, 0)

    # Drain: one wait per issued copy (all copies have identical size).
    def drain(r, carry):
        pltpu.make_async_copy(w_hbm.at[pl.ds(0, 1), :],
                              gbuf.at[0, pl.ds(0, 1), :],
                              sem.at[0]).wait()
        return carry
    lax.fori_loop(0, TB * F, drain, 0)

    G = [gbuf[f].astype(jnp.float32) for f in range(F)]
    out_ref[...] = _ffm_terms(G, F, D)


def ffm_model_forward(x, offsets, ffm_tables, lin_table, bias,
                      *, table_dtype=jnp.float32, tile_rows=_TB_DEFAULT,
                      force_gather=False, interpret=False):
    """Forward of _FieldAwareFactorizationMachineModel (normal path).

    x:          (B, F)    int32 raw per-field categorical indices
    offsets:    (F,)      int32 cumulative field offsets
    ffm_tables: (F, V, D) f32   FieldAwareFactorizationMachine embeddings
    lin_table:  (V, 1)    f32   FeaturesLinear embedding weight
    bias:       ()        f32   FeaturesLinear bias
    returns (B,) f32
    """
    B, F = x.shape
    Fw, V, D = ffm_tables.shape
    assert Fw == F

    # Glue (index arithmetic): add per-field offsets.
    idx = x.astype(jnp.int32) + offsets[None, :].astype(jnp.int32)        # (B, F)

    # Lane-dense packed table: columns [t*D:(t+1)*D] = FFM table t, column F*D
    # = linear weight, remaining lanes zero-padding.
    Vp = _round_up(V, _LANE)
    Np = _round_up(F * D + 1, _LANE)
    w2d = jnp.concatenate(
        [jnp.transpose(ffm_tables, (1, 0, 2)).reshape(V, F * D).astype(jnp.float32),
         lin_table.astype(jnp.float32).reshape(V, 1)], axis=1)            # (V, F*D+1)
    w2d = jnp.pad(w2d, ((0, Vp - V), (0, Np - (F * D + 1)))).astype(table_dtype)
    itemsize = jnp.dtype(table_dtype).itemsize

    vmem_cap = _vmem_capacity_bytes()
    TB = int(min(tile_rows, _round_up(max(B, 1), 8)))

    # Honest fast-path VMEM footprint (padded to (8,128) tiles).  The resident
    # table is counted 3x: 2 pipeline buffers (default double-buffering of the
    # constant-index_map BlockSpec; pl.Buffered(1)/a manual copy would halve
    # this but is not universally supported) plus headroom for one materialized
    # operand copy.
    fast_bytes = (
        3 * _vmem_tile_bytes((Vp, Np), itemsize)          # resident packed table
        + 2 * _vmem_tile_bytes((TB, F), 4)                # idx pipeline buffers
        + 2 * _vmem_tile_bytes((TB, 1), 4)                # out pipeline buffers
        + 3 * _vmem_tile_bytes((TB, Vp), 4)               # iota + live one-hots
        + F * _vmem_tile_bytes((TB, Np), 4)               # gathered G_f slabs
        + (2 << 20))                                      # misc temporaries
    use_fast = (not force_gather) and fast_bytes <= int(0.70 * vmem_cap)

    if use_fast:
        B_pad = _round_up(max(B, 1), TB)
        idx_padded = jnp.pad(idx, ((0, B_pad - B), (0, 0)))
        vmem_limit = int(min(max(fast_bytes + (8 << 20), 32 << 20),
                             int(0.90 * vmem_cap)))
        kernel = functools.partial(_ffm_onehot_kernel, num_fields=F, embed_dim=D)
        out = pl.pallas_call(
            kernel,
            out_shape=jax.ShapeDtypeStruct((B_pad, 1), jnp.float32),
            grid_spec=pltpu.PrefetchScalarGridSpec(
                num_scalar_prefetch=0,
                grid=(B_pad // TB,),
                in_specs=[
                    pl.BlockSpec((TB, F), lambda b: (b, 0)),
                    # Constant index_map -> the packed table is DMA'd into VMEM
                    # once and stays resident across all batch tiles.
                    pl.BlockSpec((Vp, Np), lambda b: (0, 0)),
                ],
                out_specs=pl.BlockSpec((TB, 1), lambda b: (b, 0)),
            ),
            compiler_params=pltpu.CompilerParams(
                dimension_semantics=("parallel",),   # independent batch tiles
                vmem_limit_bytes=vmem_limit,
            ),
            interpret=interpret,
        )(idx_padded, w2d)
    else:
        # Large-vocab path: table in HBM, indices scalar-prefetched into SMEM,
        # per-tile in-kernel DMA row gather, identical reduction math.
        TBg = int(min(128, TB))
        B_pad = _round_up(max(B, 1), TBg)
        idx_padded = jnp.pad(idx, ((0, B_pad - B), (0, 0)))
        idx_flat = idx_padded.reshape(-1)                 # 1-D -> compact in SMEM
        gbuf_bytes = _vmem_tile_bytes((F, TBg, Np), itemsize)
        vmem_limit = int(min(max(gbuf_bytes + (16 << 20), 32 << 20),
                             int(0.90 * vmem_cap)))
        kernel = functools.partial(_ffm_gather_kernel, num_fields=F,
                                   embed_dim=D, tile_rows=TBg)
        out = pl.pallas_call(
            kernel,
            out_shape=jax.ShapeDtypeStruct((B_pad, 1), jnp.float32),
            grid_spec=pltpu.PrefetchScalarGridSpec(
                num_scalar_prefetch=1,
                grid=(B_pad // TBg,),
                in_specs=[pl.BlockSpec(memory_space=pl.ANY)],   # table stays in HBM
                out_specs=pl.BlockSpec((TBg, 1), lambda b, idx_sref: (b, 0)),
                scratch_shapes=[
                    pltpu.VMEM((F, TBg, Np), table_dtype),
                    pltpu.SemaphoreType.DMA((1,)),
                ],
            ),
            compiler_params=pltpu.CompilerParams(
                dimension_semantics=("parallel",),
                vmem_limit_bytes=vmem_limit,
            ),
            interpret=interpret,
        )(idx_flat, w2d)

    # Glue: drop batch padding, add the FeaturesLinear bias, squeeze to (B,).
    return out[:B, 0] + jnp.asarray(bias, jnp.float32)


# TODO(synk): the torch FeaturesLinear `except` branch (dropping column 2 of x on a
# device-side failure and retrying on CUDA) is runtime error-recovery with no Pallas
# equivalent; only the normal forward path is implemented.


if __name__ == "__main__":
    key = jax.random.PRNGKey(0)
    k_lin, k_ffm, k_x = jax.random.split(key, 3)

    field_dims = np.array([3, 5, 7, 9], dtype=np.int64)   # F = 4, vocab V = 24
    embed_dim = 16
    batch = 8
    F = len(field_dims)
    V = int(field_dims.sum())

    offsets = jnp.asarray(np.array((0, *np.cumsum(field_dims)[:-1]), dtype=np.int32))

    # FeaturesLinear params (torch: Embedding default N(0,1) weight, zero bias).
    lin_table = jax.random.normal(k_lin, (V, 1), dtype=jnp.float32)
    bias = jnp.float32(0.0)

    # FFM params: F tables, xavier_uniform_  (bound = sqrt(6 / (V + D))).
    bound = float(np.sqrt(6.0 / (V + embed_dim)))
    ffm_tables = jax.random.uniform(
        k_ffm, (F, V, embed_dim), dtype=jnp.float32, minval=-bound, maxval=bound)

    # Random valid indices: x[:, f] in [0, field_dims[f]).
    maxvals = jnp.asarray(field_dims, dtype=jnp.int32)[None, :]
    x = jax.random.randint(k_x, (batch, F), 0, 10_000, dtype=jnp.int32) % maxvals

    # Pure-JAX reference mirroring the torch forward exactly.
    def reference(ffm_t, lin_t):
        idx_r = x + offsets[None, :]
        xs = [jnp.take(ffm_t[i], idx_r, axis=0) for i in range(F)]   # each (B, F, D)
        ffm_term = jnp.zeros((batch,), jnp.float32)
        for i in range(F - 1):
            for j in range(i + 1, F):
                ffm_term = ffm_term + jnp.sum(xs[j][:, i] * xs[i][:, j], axis=-1)
        lin_term = jnp.sum(jnp.take(lin_t[:, 0], idx_r, axis=0), axis=1) + bias
        return lin_term + ffm_term

    ref = reference(ffm_tables, lin_table)

    # 1) Fast resident-table path, f32 table (bit-exact gather).
    out = jax.block_until_ready(
        ffm_model_forward(x, offsets, ffm_tables, lin_table, bias))
    assert out.shape == (batch,)
    assert out.dtype == jnp.float32
    np.testing.assert_allclose(np.asarray(out), np.asarray(ref), rtol=1e-5, atol=1e-5)

    # 2) bf16 resident table (MXU-native rate, half the VMEM) vs bf16-quantized ref.
    out_bf16 = jax.block_until_ready(
        ffm_model_forward(x, offsets, ffm_tables, lin_table, bias,
                          table_dtype=jnp.bfloat16))
    ref_bf16 = reference(ffm_tables.astype(jnp.bfloat16).astype(jnp.float32),
                         lin_table.astype(jnp.bfloat16).astype(jnp.float32))
    np.testing.assert_allclose(np.asarray(out_bf16), np.asarray(ref_bf16),
                               rtol=1e-3, atol=1e-3)

    # 3) Large-vocab path (HBM table + in-kernel DMA row gather), forced for testing.
    out_g = jax.block_until_ready(
        ffm_model_forward(x, offsets, ffm_tables, lin_table, bias, force_gather=True))
    np.testing.assert_allclose(np.asarray(out_g), np.asarray(ref), rtol=1e-5, atol=1e-5)

    print("KERNEL_OK")
</pallas_src>

<mosaic_0001>
module attributes {stable_mosaic.version = 11 : i64} {
  func.func @_ffm_onehot_kernel(%arg0: i32, %arg1: memref<8x4xi32, #tpu.memory_space<vmem>>, %arg2: memref<128x128xf32, #tpu.memory_space<vmem>>, %arg3: memref<8x1xf32, #tpu.memory_space<vmem>>) attributes {dimension_semantics = [#tpu.dimension_semantics<parallel>], iteration_bounds = array<i64: 1>, scalar_prefetch = 0 : i64, scratch_operands = 0 : i64, tpu.core_type = #tpu.core_type<tc>, window_params = [{transform_indices = @transform_0, window_bounds = array<i64: 8, 4>}, {pipeline_mode = #tpu.pipeline_mode<synchronous>, transform_indices = @transform_1, window_bounds = array<i64: 128, 128>}, {transform_indices = @transform_2, window_bounds = array<i64: 8, 1>}]} {
    %c0 = arith.constant 0 : index
    %c0_0 = arith.constant 0 : index
    %0 = vector.load %arg1[%c0, %c0_0] : memref<8x4xi32, #tpu.memory_space<vmem>>, vector<8x4xi32>
    %c0_1 = arith.constant 0 : index
    %c0_2 = arith.constant 0 : index
    %1 = vector.load %arg2[%c0_1, %c0_2] : memref<128x128xf32, #tpu.memory_space<vmem>>, vector<128x128xf32>
    %2 = tpu.iota {dimensions = array<i32: 1>} : vector<8x128xi32>
    %3 = vector.extract_strided_slice %0 {offsets = [0, 0], sizes = [8, 1], strides = [1, 1]} : vector<8x4xi32> to vector<8x1xi32>
    %4 = vector.broadcast %3 : vector<8x1xi32> to vector<8x128xi32>
    %5 = arith.cmpi eq, %2, %4 : vector<8x128xi32>
    %6 = arith.extui %5 : vector<8x128xi1> to vector<8x128xi32>
    %7 = arith.sitofp %6 : vector<8x128xi32> to vector<8x128xf32>
    %cst = arith.constant dense<0.000000e+00> : vector<8x128xf32>
    %8 = tpu.matmul %7, %1, %cst {dimension_numbers = #tpu.dot_dimension_numbers<[1], [0], [0], [1], [0, 0, 1, 1], [], []>} : vector<8x128xf32>, vector<128x128xf32>, vector<8x128xf32> -> vector<8x128xf32>
    %9 = vector.extract_strided_slice %0 {offsets = [0, 1], sizes = [8, 1], strides = [1, 1]} : vector<8x4xi32> to vector<8x1xi32>
    %10 = vector.broadcast %9 : vector<8x1xi32> to vector<8x128xi32>
    %11 = arith.cmpi eq, %2, %10 : vector<8x128xi32>
    %12 = arith.extui %11 : vector<8x128xi1> to vector<8x128xi32>
    %13 = arith.sitofp %12 : vector<8x128xi32> to vector<8x128xf32>
    %cst_3 = arith.constant dense<0.000000e+00> : vector<8x128xf32>
    %14 = tpu.matmul %13, %1, %cst_3 {dimension_numbers = #tpu.dot_dimension_numbers<[1], [0], [0], [1], [0, 0, 1, 1], [], []>} : vector<8x128xf32>, vector<128x128xf32>, vector<8x128xf32> -> vector<8x128xf32>
    %15 = vector.extract_strided_slice %0 {offsets = [0, 2], sizes = [8, 1], strides = [1, 1]} : vector<8x4xi32> to vector<8x1xi32>
    %16 = vector.broadcast %15 : vector<8x1xi32> to vector<8x128xi32>
    %17 = arith.cmpi eq, %2, %16 : vector<8x128xi32>
    %18 = arith.extui %17 : vector<8x128xi1> to vector<8x128xi32>
    %19 = arith.sitofp %18 : vector<8x128xi32> to vector<8x128xf32>
    %cst_4 = arith.constant dense<0.000000e+00> : vector<8x128xf32>
    %20 = tpu.matmul %19, %1, %cst_4 {dimension_numbers = #tpu.dot_dimension_numbers<[1], [0], [0], [1], [0, 0, 1, 1], [], []>} : vector<8x128xf32>, vector<128x128xf32>, vector<8x128xf32> -> vector<8x128xf32>
    %21 = vector.extract_strided_slice %0 {offsets = [0, 3], sizes = [8, 1], strides = [1, 1]} : vector<8x4xi32> to vector<8x1xi32>
    %22 = vector.broadcast %21 : vector<8x1xi32> to vector<8x128xi32>
    %23 = arith.cmpi eq, %2, %22 : vector<8x128xi32>
    %24 = arith.extui %23 : vector<8x128xi1> to vector<8x128xi32>
    %25 = arith.sitofp %24 : vector<8x128xi32> to vector<8x128xf32>
    %cst_5 = arith.constant dense<0.000000e+00> : vector<8x128xf32>
    %26 = tpu.matmul %25, %1, %cst_5 {dimension_numbers = #tpu.dot_dimension_numbers<[1], [0], [0], [1], [0, 0, 1, 1], [], []>} : vector<8x128xf32>, vector<128x128xf32>, vector<8x128xf32> -> vector<8x128xf32>
    %27 = vector.extract_strided_slice %8 {offsets = [0, 64], sizes = [8, 1], strides = [1, 1]} : vector<8x128xf32> to vector<8x1xf32>
    %28 = vector.extract_strided_slice %14 {offsets = [0, 64], sizes = [8, 1], strides = [1, 1]} : vector<8x128xf32> to vector<8x1xf32>
    %29 = arith.addf %27, %28 : vector<8x1xf32>
    %30 = vector.extract_strided_slice %20 {offsets = [0, 64], sizes = [8, 1], strides = [1, 1]} : vector<8x128xf32> to vector<8x1xf32>
    %31 = arith.addf %29, %30 : vector<8x1xf32>
    %32 = vector.extract_strided_slice %26 {offsets = [0, 64], sizes = [8, 1], strides = [1, 1]} : vector<8x128xf32> to vector<8x1xf32>
    %33 = arith.addf %31, %32 : vector<8x1xf32>
    %34 = vector.extract_strided_slice %8 {offsets = [0, 16], sizes = [8, 16], strides = [1, 1]} : vector<8x128xf32> to vector<8x16xf32>
    %35 = vector.extract_strided_slice %14 {offsets = [0, 0], sizes = [8, 16], strides = [1, 1]} : vector<8x128xf32> to vector<8x16xf32>
    %36 = arith.mulf %34, %35 : vector<8x16xf32>
    %37 = vector.extract_strided_slice %8 {offsets = [0, 32], sizes = [8, 16], strides = [1, 1]} : vector<8x128xf32> to vector<8x16xf32>
    %38 = vector.extract_strided_slice %20 {offsets = [0, 0], sizes = [8, 16], strides = [1, 1]} : vector<8x128xf32> to vector<8x16xf32>
    %39 = arith.mulf %37, %38 : vector<8x16xf32>
    %40 = arith.addf %36, %39 : vector<8x16xf32>
    %41 = vector.extract_strided_slice %8 {offsets = [0, 48], sizes = [8, 16], strides = [1, 1]} : vector<8x128xf32> to vector<8x16xf32>
    %42 = vector.extract_strided_slice %26 {offsets = [0, 0], sizes = [8, 16], strides = [1, 1]} : vector<8x128xf32> to vector<8x16xf32>
    %43 = arith.mulf %41, %42 : vector<8x16xf32>
    %44 = arith.addf %40, %43 : vector<8x16xf32>
    %45 = vector.extract_strided_slice %14 {offsets = [0, 32], sizes = [8, 16], strides = [1, 1]} : vector<8x128xf32> to vector<8x16xf32>
    %46 = vector.extract_strided_slice %20 {offsets = [0, 16], sizes = [8, 16], strides = [1, 1]} : vector<8x128xf32> to vector<8x16xf32>
    %47 = arith.mulf %45, %46 : vector<8x16xf32>
    %48 = arith.addf %44, %47 : vector<8x16xf32>
    %49 = vector.extract_strided_slice %14 {offsets = [0, 48], sizes = [8, 16], strides = [1, 1]} : vector<8x128xf32> to vector<8x16xf32>
    %50 = vector.extract_strided_slice %26 {offsets = [0, 16], sizes = [8, 16], strides = [1, 1]} : vector<8x128xf32> to vector<8x16xf32>
    %51 = arith.mulf %49, %50 : vector<8x16xf32>
    %52 = arith.addf %48, %51 : vector<8x16xf32>
    %53 = vector.extract_strided_slice %20 {offsets = [0, 48], sizes = [8, 16], strides = [1, 1]} : vector<8x128xf32> to vector<8x16xf32>
    %54 = vector.extract_strided_slice %26 {offsets = [0, 32], sizes = [8, 16], strides = [1, 1]} : vector<8x128xf32> to vector<8x16xf32>
    %55 = arith.mulf %53, %54 : vector<8x16xf32>
    %56 = arith.addf %52, %55 : vector<8x16xf32>
    %cst_6 = arith.constant dense<0.000000e+00> : vector<8xf32>
    %57 = vector.multi_reduction <add>, %56, %cst_6 [1] : vector<8x16xf32> to vector<8xf32>
    %58 = vector.shape_cast %57 : vector<8xf32> to vector<8x1xf32>
    %59 = arith.addf %33, %58 : vector<8x1xf32>
    %c0_7 = arith.constant 0 : index
    %c0_8 = arith.constant 0 : index
    %60 = vector.load %arg3[%c0_7, %c0_8] : memref<8x1xf32, #tpu.memory_space<vmem>>, vector<8x1xf32>
    tpu.vector_store %arg3[%c0_7, %c0_8], %59 {strides = array<i32>} : memref<8x1xf32, #tpu.memory_space<vmem>>, vector<8x1xf32>,
    return
  }
  func.func @transform_0(%arg0: i32) -> (i32, i32) {
    %c0_i32 = arith.constant 0 : i32
    %c0_i32_0 = arith.constant 0 : i32
    return %arg0, %c0_i32 : i32, i32
  }
  func.func @transform_1(%arg0: i32) -> (i32, i32) {
    %c0_i32 = arith.constant 0 : i32
    %c0_i32_0 = arith.constant 0 : i32
    %c0_i32_1 = arith.constant 0 : i32
    return %c0_i32, %c0_i32_0 : i32, i32
  }
  func.func @transform_2(%arg0: i32) -> (i32, i32) {
    %c0_i32 = arith.constant 0 : i32
    %c0_i32_0 = arith.constant 0 : i32
    return %arg0, %c0_i32 : i32, i32
  }
}

</mosaic_0001>

<llo_original>
// kernel: tpu_custom_call.1
$region0: #{tpu_custom_call.1}
  #allocation0 [shape = 'u32[]', space=smem, size = 0x4, offset = 0x4, fixed_abs, tag = 'smem constant byte address 0x4 - core index']
  #allocation1 [shape = 'u32[144,128]{1,0:T(1,128)}', space=vmem, size = 0x12000, scoped, tag = 'internal scratch']
  %s0 = inlined_call_operand.vmem [shape: s32[8,4], index: 0, kind: input, shape index: {}]
  %s1 = inlined_call_operand.hbm [shape: f32[128,128], index: 1, kind: input, shape index: {}]
  %s2 = inlined_call_operand.vmem [shape: f32[8,1], index: 2, kind: output, shape index: {}]
  %s3 = sld [smem:[#allocation0]]
  $region22: #{tpu_custom_call.1} parent=0
    _
  %s5 = ssub.s32 1, %s3
  %s6 = scalar_select 0, %s5, %s3
  $region1: #{tpu_custom_call.1} parent=0
    #allocation2 [shape = 'u8[65536]{0}', space=vmem, size = 0x10000, scoped, tag = 'input window, operand 1, single buffered']
    #allocation3 [shape = 's32[1]{0}', space=sflag, size = 0x4, scoped, tag = 'scoped memory for tpu_custom_call.1']
    %7 = vsyncpa [#allocation3], 0
    // Predicated region
    $region2: #{tpu_custom_call.1} parent=1 // pred_check
      _
    $region3: #{tpu_custom_call.1} parent=1 // pred_check_branch
      %9 = sbr.rel (0) target = $region5
    $region4: #{tpu_custom_call.1} parent=1 // pred_region
      _
    $region5: #{tpu_custom_call.1} parent=1 // pred_fallthru
      _
    // Predicated region
    $region6: #{tpu_custom_call.1} parent=1 // pred_check
      _
    $region7: #{tpu_custom_call.1} parent=1 // pred_check_branch
      %11 = sbr.rel (0) target = $region9
    $region8: #{tpu_custom_call.1} parent=1 // pred_region
      %s13 = ssub.s32 2048, 2048
      %14 = vsyncadd [#allocation3], %s13
      %s15 = sshll.u32 [#allocation2], 4
      %s16 = int_to_ptr.vmem [resolvable:$true] %s15
      %21 = dma.hbm_to_vmem [thread:$0]  %s1, 2048, %s16, [#allocation3], 128, 128, 8
    $region9: #{tpu_custom_call.1} parent=1 // pred_fallthru
      _
    // Predicated region
    $region10: #{tpu_custom_call.1} parent=1 // pred_check
      _
    $region11: #{tpu_custom_call.1} parent=1 // pred_check_branch
      %23 = sbr.rel (0) target = $region13
    $region12: #{tpu_custom_call.1} parent=1 // pred_region
      %24 = dma.done [#allocation3], 2048
    $region13: #{tpu_custom_call.1} parent=1 // pred_fallthru
      _
    %v25 = vld [vmem:[%s0] sm:$0xff]
    %v26 = vld [vmem:[#allocation2] sm:$0xff]
    %v27 = vld [vmem:[#allocation2 + $0x8] sm:$0xff]
    %v28 = vld [vmem:[#allocation2 + $0x10] sm:$0xff]
    %v29 = vld [vmem:[#allocation2 + $0x18] sm:$0xff]
    %v30 = vld [vmem:[#allocation2 + $0x20] sm:$0xff]
    %v31 = vld [vmem:[#allocation2 + $0x28] sm:$0xff]
    %v32 = vld [vmem:[#allocation2 + $0x30] sm:$0xff]
    %v33 = vld [vmem:[#allocation2 + $0x38] sm:$0xff]
    %v34 = vld [vmem:[#allocation2 + $0x40] sm:$0xff]
    %v35 = vld [vmem:[#allocation2 + $0x48] sm:$0xff]
    %v36 = vld [vmem:[#allocation2 + $0x50] sm:$0xff]
    %v37 = vld [vmem:[#allocation2 + $0x58] sm:$0xff]
    %v38 = vld [vmem:[#allocation2 + $0x60] sm:$0xff]
    %v39 = vld [vmem:[#allocation2 + $0x68] sm:$0xff]
    %v40 = vld [vmem:[#allocation2 + $0x70] sm:$0xff]
    %v41 = vld [vmem:[#allocation2 + $0x78] sm:$0xff]
    %v42 = vlaneseq
    %v43 = vand.u32 %v42, 127
    %44 = vset.pattern.permute.xlu0 0
    %45 = vperm.xlu0 %44, %v25
    %v46 = vpop.permute.xlu0 %45
    %vm47 = vcmp.eq.s32.totalorder %v43, %v46
    %v48 = vsel %vm47, 1, 0
    %v49 = vcvt.s32.f32 %v48
    %50 = vmatprep.subr.mxu0 0.0
    %51 = vmatpush1.msra.mxu0 %v26
    %52 = vmatprep.subr.mxu0 0.0
    %53 = vmatpush1.msra.mxu0 %v27
    %54 = vmatprep.subr.mxu0 0.0
    %55 = vmatpush1.msra.mxu0 %v28
    %56 = vmatprep.subr.mxu0 0.0
    %57 = vmatpush1.msra.mxu0 %v29
    %58 = vmatprep.subr.mxu0 0.0
    %59 = vmatpush1.msra.mxu0 %v30
    %60 = vmatprep.subr.mxu0 0.0
    %61 = vmatpush1.msra.mxu0 %v31
    %62 = vmatprep.subr.mxu0 0.0
    %63 = vmatpush1.msra.mxu0 %v32
    %64 = vmatprep.subr.mxu0 0.0
    %65 = vmatpush1.msra.mxu0 %v33
    %66 = vmatprep.subr.mxu0 0.0
    %67 = vmatpush1.msra.mxu0 %v34
    %68 = vmatprep.subr.mxu0 0.0
    %69 = vmatpush1.msra.mxu0 %v35
    %70 = vmatprep.subr.mxu0 0.0
    %71 = vmatpush1.msra.mxu0 %v36
    %72 = vmatprep.subr.mxu0 0.0
    %73 = vmatpush1.msra.mxu0 %v37
    %74 = vmatprep.subr.mxu0 0.0
    %75 = vmatpush1.msra.mxu0 %v38
    %76 = vmatprep.subr.mxu0 0.0
    %77 = vmatpush1.msra.mxu0 %v39
    %78 = vmatprep.subr.mxu0 0.0
    %79 = vmatpush1.msra.mxu0 %v40
    %80 = vmatprep.subr.mxu0 0.0
    %81 = vmatpush1.msra.mxu0 %v41
    %82 = vmatprep.subr.mxu0 0.0
    %83 = vmatpush1.msra.mxu0 0.0
    %84 = vmatprep.subr.mxu0 0.0
    %85 = vmatpush1.msra.mxu0 0.0
    %86 = vmatprep.subr.mxu0 0.0
    %87 = vmatpush1.msra.mxu0 0.0
    %88 = vmatprep.subr.mxu0 0.0
    %89 = vmatpush1.msra.mxu0 0.0
    %90 = vmatprep.subr.mxu0 0.0
    %91 = vmatpush1.msra.mxu0 0.0
    %92 = vmatprep.subr.mxu0 0.0
    %93 = vmatpush1.msra.mxu0 0.0
    %94 = vmatprep.subr.mxu0 0.0
    %95 = vmatpush1.msra.mxu0 0.0
    %96 = vmatprep.subr.mxu0 0.0
    %97 = vmatpush1.msra.mxu0 0.0
    %98 = vmatprep.subr.mxu0 0.0
    %99 = vmatpush1.msra.mxu0 0.0
    %100 = vmatprep.subr.mxu0 0.0
    %101 = vmatpush1.msra.mxu0 0.0
    %102 = vmatprep.subr.mxu0 0.0
    %103 = vmatpush1.msra.mxu0 0.0
    %104 = vmatprep.subr.mxu0 0.0
    %105 = vmatpush1.msra.mxu0 0.0
    %106 = vmatprep.subr.mxu0 0.0
    %107 = vmatpush1.msra.mxu0 0.0
    %108 = vmatprep.subr.mxu0 0.0
    %109 = vmatpush1.msra.mxu0 0.0
    %110 = vmatprep.subr.mxu0 0.0
    %111 = vmatpush1.msra.mxu0 0.0
    %112 = vmatprep.subr.mxu0 0.0
    %113 = vmatpush1.msra.mxu0 0.0
    %114 = vmatprep.mubr.f32.mxu0 0.0
    %115 = vmatmul.mubr.f32.gmra.mrb[0].mxu0 %v49
    %v116 = vpop.f32.mrb[0].mxu0
    %v117 = vadd.f32 0.0, %v116
    %v118 = vpop.f32.mrb[0].mxu0
    %119 = vdwg.mxu0
    %120 = vset.pattern.permute.xlu0 1
    %121 = vperm.xlu0 %120, %v25
    %v122 = vpop.permute.xlu0 %121
    %vm123 = vcmp.eq.s32.totalorder %v43, %v122
    %v124 = vsel %vm123, 1, 0
    %v125 = vcvt.s32.f32 %v124
    %126 = vmatprep.subr.mxu0 0.0
    %127 = vmatpush1.msra.mxu0 %v26
    %128 = vmatprep.subr.mxu0 0.0
    %129 = vmatpush1.msra.mxu0 %v27
    %130 = vmatprep.subr.mxu0 0.0
    %131 = vmatpush1.msra.mxu0 %v28
    %132 = vmatprep.subr.mxu0 0.0
    %133 = vmatpush1.msra.mxu0 %v29
    %134 = vmatprep.subr.mxu0 0.0
    %135 = vmatpush1.msra.mxu0 %v30
    %136 = vmatprep.subr.mxu0 0.0
    %137 = vmatpush1.msra.mxu0 %v31
    %138 = vmatprep.subr.mxu0 0.0
    %139 = vmatpush1.msra.mxu0 %v32
    %140 = vmatprep.subr.mxu0 0.0
    %141 = vmatpush1.msra.mxu0 %v33
    %142 = vmatprep.subr.mxu0 0.0
    %143 = vmatpush1.msra.mxu0 %v34
    %144 = vmatprep.subr.mxu0 0.0
    %145 = vmatpush1.msra.mxu0 %v35
    %146 = vmatprep.subr.mxu0 0.0
    %147 = vmatpush1.msra.mxu0 %v36
    %148 = vmatprep.subr.mxu0 0.0
    %149 = vmatpush1.msra.mxu0 %v37
    %150 = vmatprep.subr.mxu0 0.0
    %151 = vmatpush1.msra.mxu0 %v38
    %152 = vmatprep.subr.mxu0 0.0
    %153 = vmatpush1.msra.mxu0 %v39
    %154 = vmatprep.subr.mxu0 0.0
    %155 = vmatpush1.msra.mxu0 %v40
    %156 = vmatprep.subr.mxu0 0.0
    %157 = vmatpush1.msra.mxu0 %v41
    %158 = vmatprep.subr.mxu0 0.0
    %159 = vmatpush1.msra.mxu0 0.0
    %160 = vmatprep.subr.mxu0 0.0
    %161 = vmatpush1.msra.mxu0 0.0
    %162 = vmatprep.subr.mxu0 0.0
    %163 = vmatpush1.msra.mxu0 0.0
    %164 = vmatprep.subr.mxu0 0.0
    %165 = vmatpush1.msra.mxu0 0.0
    %166 = vmatprep.subr.mxu0 0.0
    %167 = vmatpush1.msra.mxu0 0.0
    %168 = vmatprep.subr.mxu0 0.0
    %169 = vmatpush1.msra.mxu0 0.0
    %170 = vmatprep.subr.mxu0 0.0
    %171 = vmatpush1.msra.mxu0 0.0
    %172 = vmatprep.subr.mxu0 0.0
    %173 = vmatpush1.msra.mxu0 0.0
    %174 = vmatprep.subr.mxu0 0.0
    %175 = vmatpush1.msra.mxu0 0.0
    %176 = vmatprep.subr.mxu0 0.0
    %177 = vmatpush1.msra.mxu0 0.0
    %178 = vmatprep.subr.mxu0 0.0
    %179 = vmatpush1.msra.mxu0 0.0
    %180 = vmatprep.subr.mxu0 0.0
    %181 = vmatpush1.msra.mxu0 0.0
    %182 = vmatprep.subr.mxu0 0.0
    %183 = vmatpush1.msra.mxu0 0.0
    %184 = vmatprep.subr.mxu0 0.0
    %185 = vmatpush1.msra.mxu0 0.0
    %186 = vmatprep.subr.mxu0 0.0
    %187 = vmatpush1.msra.mxu0 0.0
    %188 = vmatprep.subr.mxu0 0.0
    %189 = vmatpush1.msra.mxu0 0.0
    %190 = vmatprep.mubr.f32.mxu0 0.0
    %191 = vmatmul.mubr.f32.gmra.mrb[0].mxu0 %v125
    %v192 = vpop.f32.mrb[0].mxu0
    %v193 = vadd.f32 0.0, %v192
    %v194 = vpop.f32.mrb[0].mxu0
    %195 = vdwg.mxu0
    %196 = vset.pattern.permute.xlu0 2
    %197 = vperm.xlu0 %196, %v25
    %v198 = vpop.permute.xlu0 %197
    %vm199 = vcmp.eq.s32.totalorder %v43, %v198
    %v200 = vsel %vm199, 1, 0
    %v201 = vcvt.s32.f32 %v200
    %202 = vmatprep.subr.mxu0 0.0
    %203 = vmatpush1.msra.mxu0 %v26
    %204 = vmatprep.subr.mxu0 0.0
    %205 = vmatpush1.msra.mxu0 %v27
    %206 = vmatprep.subr.mxu0 0.0
    %207 = vmatpush1.msra.mxu0 %v28
    %208 = vmatprep.subr.mxu0 0.0
    %209 = vmatpush1.msra.mxu0 %v29
    %210 = vmatprep.subr.mxu0 0.0
    %211 = vmatpush1.msra.mxu0 %v30
    %212 = vmatprep.subr.mxu0 0.0
    %213 = vmatpush1.msra.mxu0 %v31
    %214 = vmatprep.subr.mxu0 0.0
    %215 = vmatpush1.msra.mxu0 %v32
    %216 = vmatprep.subr.mxu0 0.0
    %217 = vmatpush1.msra.mxu0 %v33
    %218 = vmatprep.subr.mxu0 0.0
    %219 = vmatpush1.msra.mxu0 %v34
    %220 = vmatprep.subr.mxu0 0.0
    %221 = vmatpush1.msra.mxu0 %v35
    %222 = vmatprep.subr.mxu0 0.0
    %223 = vmatpush1.msra.mxu0 %v36
    %224 = vmatprep.subr.mxu0 0.0
    %225 = vmatpush1.msra.mxu0 %v37
    %226 = vmatprep.subr.mxu0 0.0
    %227 = vmatpush1.msra.mxu0 %v38
    %228 = vmatprep.subr.mxu0 0.0
    %229 = vmatpush1.msra.mxu0 %v39
    %230 = vmatprep.subr.mxu0 0.0
    %231 = vmatpush1.msra.mxu0 %v40
    %232 = vmatprep.subr.mxu0 0.0
    %233 = vmatpush1.msra.mxu0 %v41
    %234 = vmatprep.subr.mxu0 0.0
    %235 = vmatpush1.msra.mxu0 0.0
    %236 = vmatprep.subr.mxu0 0.0
    %237 = vmatpush1.msra.mxu0 0.0
    %238 = vmatprep.subr.mxu0 0.0
    %239 = vmatpush1.msra.mxu0 0.0
    %240 = vmatprep.subr.mxu0 0.0
    %241 = vmatpush1.msra.mxu0 0.0
    %242 = vmatprep.subr.mxu0 0.0
    %243 = vmatpush1.msra.mxu0 0.0
    %244 = vmatprep.subr.mxu0 0.0
    %245 = vmatpush1.msra.mxu0 0.0
    %246 = vmatprep.subr.mxu0 0.0
    %247 = vmatpush1.msra.mxu0 0.0
    %248 = vmatprep.subr.mxu0 0.0
    %249 = vmatpush1.msra.mxu0 0.0
    %250 = vmatprep.subr.mxu0 0.0
    %251 = vmatpush1.msra.mxu0 0.0
    %252 = vmatprep.subr.mxu0 0.0
    %253 = vmatpush1.msra.mxu0 0.0
    %254 = vmatprep.subr.mxu0 0.0
    %255 = vmatpush1.msra.mxu0 0.0
    %256 = vmatprep.subr.mxu0 0.0
    %257 = vmatpush1.msra.mxu0 0.0
    %258 = vmatprep.subr.mxu0 0.0
    %259 = vmatpush1.msra.mxu0 0.0
    %260 = vmatprep.subr.mxu0 0.0
    %261 = vmatpush1.msra.mxu0 0.0
    %262 = vmatprep.subr.mxu0 0.0
    %263 = vmatpush1.msra.mxu0 0.0
    %264 = vmatprep.subr.mxu0 0.0
    %265 = vmatpush1.msra.mxu0 0.0
    %266 = vmatprep.mubr.f32.mxu0 0.0
    %267 = vmatmul.mubr.f32.gmra.mrb[0].mxu0 %v201
    %v268 = vpop.f32.mrb[0].mxu0
    %v269 = vadd.f32 0.0, %v268
    %v270 = vpop.f32.mrb[0].mxu0
    %271 = vdwg.mxu0
    %272 = vset.pattern.permute.xlu0 3
    %273 = vperm.xlu0 %272, %v25
    %v274 = vpop.permute.xlu0 %273
    %vm275 = vcmp.eq.s32.totalorder %v43, %v274
    %v276 = vsel %vm275, 1, 0
    %v277 = vcvt.s32.f32 %v276
    %278 = vmatprep.subr.mxu0 0.0
    %279 = vmatpush1.msra.mxu0 %v26
    %280 = vmatprep.subr.mxu0 0.0
    %281 = vmatpush1.msra.mxu0 %v27
    %282 = vmatprep.subr.mxu0 0.0
    %283 = vmatpush1.msra.mxu0 %v28
    %284 = vmatprep.subr.mxu0 0.0
    %285 = vmatpush1.msra.mxu0 %v29
    %286 = vmatprep.subr.mxu0 0.0
    %287 = vmatpush1.msra.mxu0 %v30
    %288 = vmatprep.subr.mxu0 0.0
    %289 = vmatpush1.msra.mxu0 %v31
    %290 = vmatprep.subr.mxu0 0.0
    %291 = vmatpush1.msra.mxu0 %v32
    %292 = vmatprep.subr.mxu0 0.0
    %293 = vmatpush1.msra.mxu0 %v33
    %294 = vmatprep.subr.mxu0 0.0
    %295 = vmatpush1.msra.mxu0 %v34
    %296 = vmatprep.subr.mxu0 0.0
    %297 = vmatpush1.msra.mxu0 %v35
    %298 = vmatprep.subr.mxu0 0.0
    %299 = vmatpush1.msra.mxu0 %v36
    %300 = vmatprep.subr.mxu0 0.0
    %301 = vmatpush1.msra.mxu0 %v37
    %302 = vmatprep.subr.mxu0 0.0
    %303 = vmatpush1.msra.mxu0 %v38
    %304 = vmatprep.subr.mxu0 0.0
    %305 = vmatpush1.msra.mxu0 %v39
    %306 = vmatprep.subr.mxu0 0.0
    %307 = vmatpush1.msra.mxu0 %v40
    %308 = vmatprep.subr.mxu0 0.0
    %309 = vmatpush1.msra.mxu0 %v41
    %310 = vmatprep.subr.mxu0 0.0
    %311 = vmatpush1.msra.mxu0 0.0
    %312 = vmatprep.subr.mxu0 0.0
    %313 = vmatpush1.msra.mxu0 0.0
    %314 = vmatprep.subr.mxu0 0.0
    %315 = vmatpush1.msra.mxu0 0.0
    %316 = vmatprep.subr.mxu0 0.0
    %317 = vmatpush1.msra.mxu0 0.0
    %318 = vmatprep.subr.mxu0 0.0
    %319 = vmatpush1.msra.mxu0 0.0
    %320 = vmatprep.subr.mxu0 0.0
    %321 = vmatpush1.msra.mxu0 0.0
    %322 = vmatprep.subr.mxu0 0.0
    %323 = vmatpush1.msra.mxu0 0.0
    %324 = vmatprep.subr.mxu0 0.0
    %325 = vmatpush1.msra.mxu0 0.0
    %326 = vmatprep.subr.mxu0 0.0
    %327 = vmatpush1.msra.mxu0 0.0
    %328 = vmatprep.subr.mxu0 0.0
    %329 = vmatpush1.msra.mxu0 0.0
    %330 = vmatprep.subr.mxu0 0.0
    %331 = vmatpush1.msra.mxu0 0.0
    %332 = vmatprep.subr.mxu0 0.0
    %333 = vmatpush1.msra.mxu0 0.0
    %334 = vmatprep.subr.mxu0 0.0
    %335 = vmatpush1.msra.mxu0 0.0
    %336 = vmatprep.subr.mxu0 0.0
    %337 = vmatpush1.msra.mxu0 0.0
    %338 = vmatprep.subr.mxu0 0.0
    %339 = vmatpush1.msra.mxu0 0.0
    %340 = vmatprep.subr.mxu0 0.0
    %341 = vmatpush1.msra.mxu0 0.0
    %342 = vmatprep.mubr.f32.mxu0 0.0
    %343 = vmatmul.mubr.f32.gmra.mrb[0].mxu0 %v277
    %v344 = vpop.f32.mrb[0].mxu0
    %v345 = vadd.f32 0.0, %v344
    %v346 = vpop.f32.mrb[0].mxu0
    %347 = vdwg.mxu0
    %v348 = vadd.f32 %v117, %v193
    %v349 = vadd.f32 %v348, %v269
    %v350 = vadd.f32 %v349, %v345
    %352 = vrot.lane.b32.xlu0 %v193, 16
    %v353 = vpop.permute.xlu0 %352
    %v355 = vmul.f32 %v117, %v353
    %357 = vrot.lane.b32.xlu0 %v269, 32
    %v358 = vpop.permute.xlu0 %357
    %v360 = vmul.f32 %v117, %v358
    %362 = vrot.lane.b32.xlu0 %v360, 112
    %v363 = vpop.permute.xlu0 %362
    %v365 = vadd.f32 %v355, %v363
    %367 = vrot.lane.b32.xlu0 %v345, 48
    %v368 = vpop.permute.xlu0 %367
    %v370 = vmul.f32 %v117, %v368
    %372 = vrot.lane.b32.xlu0 %v370, 96
    %v373 = vpop.permute.xlu0 %372
    %v375 = vadd.f32 %v365, %v373
    %376 = vrot.lane.b32.xlu0 %v269, 16
    %v377 = vpop.permute.xlu0 %376
    %v379 = vmul.f32 %v193, %v377
    %381 = vrot.lane.b32.xlu0 %v379, 112
    %v382 = vpop.permute.xlu0 %381
    %v384 = vadd.f32 %v375, %v382
    %385 = vrot.lane.b32.xlu0 %v345, 32
    %v386 = vpop.permute.xlu0 %385
    %v388 = vmul.f32 %v193, %v386
    %390 = vrot.lane.b32.xlu0 %v388, 96
    %v391 = vpop.permute.xlu0 %390
    %v393 = vadd.f32 %v384, %v391
    %394 = vrot.lane.b32.xlu0 %v345, 16
    %v395 = vpop.permute.xlu0 %394
    %v397 = vmul.f32 %v269, %v395
    %399 = vrot.lane.b32.xlu0 %v397, 96
    %v400 = vpop.permute.xlu0 %399
    %v402 = vadd.f32 %v393, %v400
    %404 = vrot.lane.b32.xlu0 %v402, 112
    %v405 = vpop.permute.xlu0 %404
    %vm407 = vcmask 130048
    %v408 = vsel %vm407, %v405, 0.0
    %409 = vadd.xlane.f32.xlu0 %v408
    %v410 = vpop.xlane.xlu0 %409
    %v411 = vadd.f32 %v350, %v410
    %413 = vrot.lane.b32.xlu0 %v411, 64
    %v414 = vpop.permute.xlu0 %413
    %vm416 = vcmask 7168
    %417 = vst.msk [vmem:[%s2] sm:$0xff] %vm416, %v414
    // Predicated region
    $region14: #{tpu_custom_call.1} parent=1 // pred_check
      _
    $region15: #{tpu_custom_call.1} parent=1 // pred_check_branch
      %419 = sbr.rel (0) target = $region17
    $region16: #{tpu_custom_call.1} parent=1 // pred_region
      _
    $region17: #{tpu_custom_call.1} parent=1 // pred_fallthru
      _
    // Predicated region
    $region18: #{tpu_custom_call.1} parent=1 // pred_check
      _
    $region19: #{tpu_custom_call.1} parent=1 // pred_check_branch
      %421 = sbr.rel (0) target = $region21
    $region20: #{tpu_custom_call.1} parent=1 // pred_region
      _
    $region21: #{tpu_custom_call.1} parent=1 // pred_fallthru
      _
    %422 = vsyncpa [#allocation3], 1

</llo_original>
